<compile_context>
chip_gen: v6e
topology: v6e:2x2x1
jax: 0.10.0
libtpu: 0.0.40
codegen_flags: <defaults>
</compile_context>

<pallas_src>
import jax
import jax.numpy as jnp
from jax.experimental import pallas as pl
from jax.experimental.pallas import tpu as pltpu

HIDDEN = 100          # PyTorch hidden size
S_PAD = 8             # padded input width (s_dim features + 1 bias col + zeros)
H_PAD = 128           # per-head hidden padded to one lane tile
H2 = 2 * H_PAD        # fused hidden width (pi head | v head) = 256
OUT_PAD = 128         # lane-dense fused output width (logits | value | zero pad)


def _net_kernel(x_ref, w1b_ref, w2_ref, out_ref):
    """x:[B,8] (last cols: 1.0 bias col + zeros), w1b:[8,256], w2:[256,128]."""
    # Fused first layer for both heads; bias comes in via the constant-1 column
    # of x hitting the bias row of w1b.  Lane 255 becomes the constant hidden
    # carrier unit (relu(1) = 1) that re-injects the second-layer biases.
    h = jnp.maximum(
        jnp.dot(x_ref[...], w1b_ref[...], preferred_element_type=jnp.float32),
        0.0)

    # Fused block-diagonal second layer (+ biases via the carrier unit).
    # h is cast to the slab dtype (no-op for f32, bf16 for the bf16 slab);
    # accumulation stays f32 on the MXU.
    out = jnp.dot(h.astype(w2_ref.dtype), w2_ref[...],
                  preferred_element_type=jnp.float32)
    out_ref[...] = out.astype(out_ref.dtype)   # single lane-dense [B,128] store


def pack_params(params, s_dim, a_dim, *, w2_dtype=jnp.float32):
    """Pack the 8 per-layer tensors into 2 DMA-friendly slabs (done once)."""
    # Packing-layout preconditions (see review correctness concerns).
    assert s_dim <= S_PAD - 1, "packing needs s_dim <= 7 (bias row at index s_dim)"
    assert a_dim + 1 <= OUT_PAD, "packing needs a_dim + value column <= 128 lanes"

    # --- first-layer slab: [8, 256] ---
    w1b = jnp.zeros((S_PAD, H2), jnp.float32)
    w1b = w1b.at[:s_dim, 0:HIDDEN].set(params["w_pi1"])                 # pi head
    w1b = w1b.at[:s_dim, H_PAD:H_PAD + HIDDEN].set(params["w_v1"])      # v head
    w1b = w1b.at[s_dim, 0:HIDDEN].set(params["b_pi1"].reshape(-1))      # biases live
    w1b = w1b.at[s_dim, H_PAD:H_PAD + HIDDEN].set(params["b_v1"].reshape(-1))
    w1b = w1b.at[s_dim, H2 - 1].set(1.0)              # constant-1 bias-carrier unit
    # NOTE: carrier trick relies on relu(1) == 1; re-derive if activation changes.

    # --- second-layer slab: [256, 128] (block diagonal + bias row) ---
    w2 = jnp.zeros((H2, OUT_PAD), jnp.float32)
    w2 = w2.at[0:HIDDEN, 0:a_dim].set(params["w_pi2"])                       # logits
    w2 = w2.at[H_PAD:H_PAD + HIDDEN, a_dim].set(params["w_v2"].reshape(-1))  # value
    w2 = w2.at[H2 - 1, 0:a_dim].set(params["b_pi2"].reshape(-1))             # b_pi2
    w2 = w2.at[H2 - 1, a_dim].set(params["b_v2"].reshape(()))                # b_v2
    return w1b, w2.astype(w2_dtype)


def net_forward(x, w1b, w2, a_dim, *, block_b=256):
    """x: [B, s_dim] f32; (w1b, w2) from pack_params. Returns (logits, values)."""
    B, s_dim = x.shape
    assert s_dim <= S_PAD - 1

    # Fold the first-layer bias into the matmul: constant-1 column at index
    # s_dim, zero padding to a full K=8 sublane tile (caller-side, tiny).
    x_pad = jnp.concatenate(
        [x.astype(jnp.float32),
         jnp.ones((B, 1), jnp.float32),
         jnp.zeros((B, S_PAD - s_dim - 1), jnp.float32)],
        axis=1)

    out_shape = jax.ShapeDtypeStruct((B, OUT_PAD), jnp.float32)

    if B > block_b and B % block_b == 0:
        # Throughput path: batch grid, parallel semantics (sharded across the
        # two v7x TensorCores; harmless serial loop on v5e/v6e).
        out = pl.pallas_call(
            _net_kernel,
            out_shape=out_shape,
            grid=(B // block_b,),
            in_specs=[pl.BlockSpec((block_b, S_PAD), lambda i: (i, 0)),
                      pl.BlockSpec((S_PAD, H2), lambda i: (0, 0)),
                      pl.BlockSpec((H2, OUT_PAD), lambda i: (0, 0))],
            out_specs=pl.BlockSpec((block_b, OUT_PAD), lambda i: (i, 0)),
            compiler_params=pltpu.CompilerParams(
                dimension_semantics=("parallel",)),
        )(x_pad, w1b, w2)
    else:
        # Latency path (small B): gridless, whole arrays resident in VMEM.
        out = pl.pallas_call(
            _net_kernel,
            out_shape=out_shape,
            in_specs=[pl.BlockSpec(memory_space=pltpu.MemorySpace.VMEM)] * 3,
            out_specs=pl.BlockSpec(memory_space=pltpu.MemorySpace.VMEM),
        )(x_pad, w1b, w2)

    # Slicing here keeps the PyTorch (logits, values) return contract.  In a
    # real A3C loop the softmax/sampling/value consumers would be fused into
    # the kernel epilogue instead of paying two extra tiny XLA dispatches.
    logits = out[:, :a_dim]
    values = out[:, a_dim:a_dim + 1]
    return logits, values


def init_params(key, s_dim, a_dim, hidden=HIDDEN, bias_std=0.1):
    """A3C set_init uses N(0, 0.1) weights and zero biases; we draw small random
    biases here so the bias-folding path is exercised by the correctness check."""
    k1, k2, k3, k4, k5, k6, k7, k8 = jax.random.split(key, 8)
    std = 0.1
    return {
        "w_pi1": std * jax.random.normal(k1, (s_dim, hidden), jnp.float32),
        "b_pi1": bias_std * jax.random.normal(k5, (hidden,), jnp.float32),
        "w_pi2": std * jax.random.normal(k2, (hidden, a_dim), jnp.float32),
        "b_pi2": bias_std * jax.random.normal(k6, (a_dim,), jnp.float32),
        "w_v1": std * jax.random.normal(k3, (s_dim, hidden), jnp.float32),
        "b_v1": bias_std * jax.random.normal(k7, (hidden,), jnp.float32),
        "w_v2": std * jax.random.normal(k4, (hidden, 1), jnp.float32),
        "b_v2": bias_std * jax.random.normal(k8, (1,), jnp.float32),
    }


if __name__ == "__main__":
    # CartPole: s_dim=4 (state), a_dim=2 (actions).
    s_dim, a_dim = 4, 2

    key = jax.random.PRNGKey(0)
    pkey, xkey1, xkey2 = jax.random.split(key, 3)
    params = init_params(pkey, s_dim, a_dim)

    def torch_ref(x):
        """Pure-JAX reference (unfused, matches PyTorch Net.forward)."""
        h_pi = jnp.maximum(x @ params["w_pi1"] + params["b_pi1"][None, :], 0.0)
        logits = h_pi @ params["w_pi2"] + params["b_pi2"][None, :]
        h_v = jnp.maximum(x @ params["w_v1"] + params["b_v1"][None, :], 0.0)
        values = h_v @ params["w_v2"] + params["b_v2"][None, :]
        return logits, values

    # --- latency case: tiny batch, gridless, f32 slabs -----------------------
    w1b, w2 = pack_params(params, s_dim, a_dim)
    x_small = jax.random.normal(xkey1, (8, s_dim), jnp.float32)
    logits, values = net_forward(x_small, w1b, w2, a_dim)
    jax.block_until_ready((logits, values))
    ref_l, ref_v = torch_ref(x_small)
    assert logits.shape == (8, a_dim) and values.shape == (8, 1)
    assert jnp.allclose(logits, ref_l, atol=1e-5, rtol=1e-5)
    assert jnp.allclose(values, ref_v, atol=1e-5, rtol=1e-5)

    # --- throughput case: larger batch, batch grid (parallel across v7x TCs) -
    x_big = jax.random.normal(xkey2, (512, s_dim), jnp.float32)
    logits_b, values_b = net_forward(x_big, w1b, w2, a_dim, block_b=256)
    jax.block_until_ready((logits_b, values_b))
    ref_lb, ref_vb = torch_ref(x_big)
    assert logits_b.shape == (512, a_dim) and values_b.shape == (512, 1)
    assert jnp.allclose(logits_b, ref_lb, atol=1e-5, rtol=1e-5)
    assert jnp.allclose(values_b, ref_vb, atol=1e-5, rtol=1e-5)

    # --- bf16 w2 slab (halves the dominant DMA); f32 MXU accumulation --------
    w1b_16, w2_bf16 = pack_params(params, s_dim, a_dim, w2_dtype=jnp.bfloat16)
    logits16, values16 = net_forward(x_big, w1b_16, w2_bf16, a_dim, block_b=256)
    jax.block_until_ready((logits16, values16))
    assert jnp.allclose(logits16, ref_lb, atol=3e-2, rtol=3e-2)
    assert jnp.allclose(values16, ref_vb, atol=3e-2, rtol=3e-2)

    print("KERNEL_OK")
</pallas_src>

<mosaic_0001>
module attributes {stable_mosaic.version = 11 : i64} {
  func.func @_net_kernel(%arg0: memref<8x8xf32, #tpu.memory_space<vmem>>, %arg1: memref<8x256xf32, #tpu.memory_space<vmem>>, %arg2: memref<256x128xf32, #tpu.memory_space<vmem>>, %arg3: memref<8x128xf32, #tpu.memory_space<vmem>>) attributes {dimension_semantics = [], scalar_prefetch = 0 : i64, scratch_operands = 0 : i64, tpu.core_type = #tpu.core_type<tc>} {
    %c0 = arith.constant 0 : index
    %c0_0 = arith.constant 0 : index
    %0 = vector.load %arg0[%c0, %c0_0] : memref<8x8xf32, #tpu.memory_space<vmem>>, vector<8x8xf32>
    %c0_1 = arith.constant 0 : index
    %c0_2 = arith.constant 0 : index
    %1 = vector.load %arg1[%c0_1, %c0_2] : memref<8x256xf32, #tpu.memory_space<vmem>>, vector<8x256xf32>
    %cst = arith.constant dense<0.000000e+00> : vector<8x256xf32>
    %2 = tpu.matmul %0, %1, %cst {dimension_numbers = #tpu.dot_dimension_numbers<[1], [0], [0], [1], [0, 0, 1, 1], [], []>} : vector<8x8xf32>, vector<8x256xf32>, vector<8x256xf32> -> vector<8x256xf32>
    %cst_3 = arith.constant 0.000000e+00 : f32
    %3 = vector.broadcast %cst_3 : f32 to vector<8x256xf32>
    %4 = arith.maximumf %2, %3 : vector<8x256xf32>
    %c0_4 = arith.constant 0 : index
    %c0_5 = arith.constant 0 : index
    %5 = vector.load %arg2[%c0_4, %c0_5] : memref<256x128xf32, #tpu.memory_space<vmem>>, vector<256x128xf32>
    %cst_6 = arith.constant dense<0.000000e+00> : vector<8x128xf32>
    %6 = tpu.matmul %4, %5, %cst_6 {dimension_numbers = #tpu.dot_dimension_numbers<[1], [0], [0], [1], [0, 0, 1, 1], [], []>} : vector<8x256xf32>, vector<256x128xf32>, vector<8x128xf32> -> vector<8x128xf32>
    %c0_7 = arith.constant 0 : index
    %c0_8 = arith.constant 0 : index
    %7 = vector.load %arg3[%c0_7, %c0_8] : memref<8x128xf32, #tpu.memory_space<vmem>>, vector<8x128xf32>
    tpu.vector_store %arg3[%c0_7, %c0_8], %6 {strides = array<i32>} : memref<8x128xf32, #tpu.memory_space<vmem>>, vector<8x128xf32>,
    return
  }
}

</mosaic_0001>

<llo_original>
// kernel: tpu_custom_call.1
$region0: #{tpu_custom_call.1}
  #allocation0 [shape = 'u32[]', space=smem, size = 0x4, offset = 0x4, fixed_abs, tag = 'smem constant byte address 0x4 - core index']
  #allocation1 [shape = 'u32[144,128]{1,0:T(1,128)}', space=vmem, size = 0x12000, scoped, tag = 'internal scratch']
  %s0 = inlined_call_operand.hbm [shape: f32[8,8], index: 0, kind: input, shape index: {}]
  %s1 = inlined_call_operand.hbm [shape: f32[8,256], index: 1, kind: input, shape index: {}]
  %s2 = inlined_call_operand.hbm [shape: f32[256,128], index: 2, kind: input, shape index: {}]
  %s3 = inlined_call_operand.hbm [shape: f32[8,128], index: 3, kind: output, shape index: {}]
  %s4 = sld [smem:[#allocation0]]
  $region34: #{tpu_custom_call.1} parent=0
    _
  %s6 = ssub.s32 1, %s4
  %s7 = scalar_select 0, %s6, %s4
  $region1: #{tpu_custom_call.1} parent=0
    #allocation2 [shape = 'u8[4096]{0}', space=vmem, size = 0x1000, scoped, tag = 'input window, operand 0, single buffered']
    #allocation3 [shape = 's32[1]{0}', space=sflag, size = 0x4, scoped, tag = 'scoped memory for tpu_custom_call.1']
    #allocation4 [shape = 's32[1]{0}', space=sflag, size = 0x4, scoped, tag = 'scoped memory for tpu_custom_call.1']
    #allocation5 [shape = 'u8[8192]{0}', space=vmem, size = 0x2000, scoped, tag = 'input window, operand 1, single buffered']
    #allocation6 [shape = 's32[1]{0}', space=sflag, size = 0x4, scoped, tag = 'scoped memory for tpu_custom_call.1']
    #allocation7 [shape = 'u8[131072]{0}', space=vmem, size = 0x20000, scoped, tag = 'input window, operand 2, single buffered']
    #allocation8 [shape = 'u8[4096]{0}', space=vmem, size = 0x1000, scoped, tag = 'output window, operand 0, single buffered']
    %8 = vsyncpa [#allocation3], 0
    %9 = vsyncpa [#allocation6], 0
    %10 = vsyncpa [#allocation4], 0
    // Predicated region
    $region2: #{tpu_custom_call.1} parent=1 // pred_check
      _
    $region3: #{tpu_custom_call.1} parent=1 // pred_check_branch
      %12 = sbr.rel (0) target = $region5
    $region4: #{tpu_custom_call.1} parent=1 // pred_region
      %s14 = ssub.s32 128, 128
      %15 = vsyncadd [#allocation3], %s14
      %s17 = sshll.u32 [#allocation2], 4
      %s18 = int_to_ptr.vmem [resolvable:$true] %s17
      %20 = dma.hbm_to_vmem [thread:$0]  %s0, 128, %s18, [#allocation3]
    $region5: #{tpu_custom_call.1} parent=1 // pred_fallthru
      _
    // Predicated region
    $region6: #{tpu_custom_call.1} parent=1 // pred_check
      _
    $region7: #{tpu_custom_call.1} parent=1 // pred_check_branch
      %22 = sbr.rel (0) target = $region9
    $region8: #{tpu_custom_call.1} parent=1 // pred_region
      %s24 = ssub.s32 256, 256
      %25 = vsyncadd [#allocation6], %s24
      %s27 = sshll.u32 [#allocation5], 4
      %s28 = int_to_ptr.vmem [resolvable:$true] %s27
      %30 = dma.hbm_to_vmem [thread:$0]  %s1, 256, %s28, [#allocation6]
    $region9: #{tpu_custom_call.1} parent=1 // pred_fallthru
      _
    // Predicated region
    $region10: #{tpu_custom_call.1} parent=1 // pred_check
      _
    $region11: #{tpu_custom_call.1} parent=1 // pred_check_branch
      %32 = sbr.rel (0) target = $region13
    $region12: #{tpu_custom_call.1} parent=1 // pred_region
      %s34 = ssub.s32 4096, 4096
      %35 = vsyncadd [#allocation6], %s34
      %s36 = sshll.u32 [#allocation7], 4
      %s37 = int_to_ptr.vmem [resolvable:$true] %s36
      %42 = dma.hbm_to_vmem [thread:$0]  %s2, 4096, %s37, [#allocation6], 128, 128, 8
    $region13: #{tpu_custom_call.1} parent=1 // pred_fallthru
      _
    // Predicated region
    $region14: #{tpu_custom_call.1} parent=1 // pred_check
      _
    $region15: #{tpu_custom_call.1} parent=1 // pred_check_branch
      %44 = sbr.rel (0) target = $region17
    $region16: #{tpu_custom_call.1} parent=1 // pred_region
      %45 = dma.done [#allocation3], 128
    $region17: #{tpu_custom_call.1} parent=1 // pred_fallthru
      _
    // Predicated region
    $region18: #{tpu_custom_call.1} parent=1 // pred_check
      _
    $region19: #{tpu_custom_call.1} parent=1 // pred_check_branch
      %47 = sbr.rel (0) target = $region21
    $region20: #{tpu_custom_call.1} parent=1 // pred_region
      %48 = dma.done [#allocation6], 256
    $region21: #{tpu_custom_call.1} parent=1 // pred_fallthru
      _
    // Predicated region
    $region22: #{tpu_custom_call.1} parent=1 // pred_check
      _
    $region23: #{tpu_custom_call.1} parent=1 // pred_check_branch
      %50 = sbr.rel (0) target = $region25
    $region24: #{tpu_custom_call.1} parent=1 // pred_region
      %51 = dma.done [#allocation6], 4096
    $region25: #{tpu_custom_call.1} parent=1 // pred_fallthru
      _
    %v52 = vld [vmem:[#allocation2] sm:$0xff]
    %v53 = vld [vmem:[#allocation5] sm:$0xff]
    %v54 = vld [vmem:[#allocation5 + $0x8] sm:$0xff]
    %vm55 = vcmask 64512
    %v57 = vsel %vm55, %v52, 0
    %59 = vmatprep.subr.mxu0 0.0
    %60 = vmatpush1.msra.mxu0 0.0
    %61 = vmatprep.subr.mxu0 0.0
    %62 = vmatpush1.msra.mxu0 0.0
    %63 = vmatprep.subr.mxu0 0.0
    %64 = vmatpush1.msra.mxu0 0.0
    %65 = vmatprep.subr.mxu0 0.0
    %66 = vmatpush1.msra.mxu0 0.0
    %67 = vmatprep.subr.mxu0 0.0
    %68 = vmatpush1.msra.mxu0 0.0
    %69 = vmatprep.subr.mxu0 0.0
    %70 = vmatpush1.msra.mxu0 0.0
    %71 = vmatprep.subr.mxu0 0.0
    %72 = vmatpush1.msra.mxu0 0.0
    %73 = vmatprep.subr.mxu0 0.0
    %74 = vmatpush1.msra.mxu0 0.0
    %75 = vmatprep.subr.mxu0 0.0
    %76 = vmatpush1.msra.mxu0 0.0
    %77 = vmatprep.subr.mxu0 0.0
    %78 = vmatpush1.msra.mxu0 0.0
    %79 = vmatprep.subr.mxu0 0.0
    %80 = vmatpush1.msra.mxu0 0.0
    %81 = vmatprep.subr.mxu0 0.0
    %82 = vmatpush1.msra.mxu0 0.0
    %83 = vmatprep.subr.mxu0 0.0
    %84 = vmatpush1.msra.mxu0 0.0
    %85 = vmatprep.subr.mxu0 0.0
    %86 = vmatpush1.msra.mxu0 0.0
    %87 = vmatprep.subr.mxu0 0.0
    %88 = vmatpush1.msra.mxu0 0.0
    %89 = vmatprep.subr.mxu0 %v54
    %90 = vmatpush1.msra.mxu0 %v53
    %91 = vmatprep.subr.mxu0 0.0
    %92 = vmatpush2.msra.mxu0 0.0
    %93 = vmatprep.subr.mxu0 0.0
    %94 = vmatpush2.msra.mxu0 0.0
    %95 = vmatprep.subr.mxu0 0.0
    %96 = vmatpush2.msra.mxu0 0.0
    %97 = vmatprep.subr.mxu0 0.0
    %98 = vmatpush2.msra.mxu0 0.0
    %99 = vmatprep.subr.mxu0 0.0
    %100 = vmatpush2.msra.mxu0 0.0
    %101 = vmatprep.subr.mxu0 0.0
    %102 = vmatpush2.msra.mxu0 0.0
    %103 = vmatprep.subr.mxu0 0.0
    %104 = vmatpush2.msra.mxu0 0.0
    %105 = vmatprep.subr.mxu0 0.0
    %106 = vmatpush2.msra.mxu0 0.0
    %107 = vmatprep.subr.mxu0 0.0
    %108 = vmatpush2.msra.mxu0 0.0
    %109 = vmatprep.subr.mxu0 0.0
    %110 = vmatpush2.msra.mxu0 0.0
    %111 = vmatprep.subr.mxu0 0.0
    %112 = vmatpush2.msra.mxu0 0.0
    %113 = vmatprep.subr.mxu0 0.0
    %114 = vmatpush2.msra.mxu0 0.0
    %115 = vmatprep.subr.mxu0 0.0
    %116 = vmatpush2.msra.mxu0 0.0
    %117 = vmatprep.subr.mxu0 0.0
    %118 = vmatpush2.msra.mxu0 0.0
    %119 = vmatprep.subr.mxu0 0.0
    %120 = vmatpush2.msra.mxu0 0.0
    %121 = vmatprep.subr.mxu0 0.0
    %122 = vmatpush2.msra.mxu0 0.0
    %123 = vmatprep.mubr.f32.mxu0 0.0
    %124 = vmatmul.mubr.f32.gmra.mxu0 %v57
    %v125 = vpop.f32.mrf.mxu0
    %v126 = vadd.f32 0.0, %v125
    %v127 = vpop.f32.mrf.mxu0
    %v128 = vadd.f32 0.0, %v127
    %129 = vdwg.mxu0
    %v130 = vmax.f32 %v126, 0.0
    %v131 = vmax.f32 %v128, 0.0
    %v132 = vld [vmem:[#allocation7] sm:$0xff]
    %v133 = vld [vmem:[#allocation7 + $0x8] sm:$0xff]
    %v134 = vld [vmem:[#allocation7 + $0x10] sm:$0xff]
    %v135 = vld [vmem:[#allocation7 + $0x18] sm:$0xff]
    %v136 = vld [vmem:[#allocation7 + $0x20] sm:$0xff]
    %v137 = vld [vmem:[#allocation7 + $0x28] sm:$0xff]
    %v138 = vld [vmem:[#allocation7 + $0x30] sm:$0xff]
    %v139 = vld [vmem:[#allocation7 + $0x38] sm:$0xff]
    %v140 = vld [vmem:[#allocation7 + $0x40] sm:$0xff]
    %v141 = vld [vmem:[#allocation7 + $0x48] sm:$0xff]
    %v142 = vld [vmem:[#allocation7 + $0x50] sm:$0xff]
    %v143 = vld [vmem:[#allocation7 + $0x58] sm:$0xff]
    %v144 = vld [vmem:[#allocation7 + $0x60] sm:$0xff]
    %v145 = vld [vmem:[#allocation7 + $0x68] sm:$0xff]
    %v146 = vld [vmem:[#allocation7 + $0x70] sm:$0xff]
    %v147 = vld [vmem:[#allocation7 + $0x78] sm:$0xff]
    %v148 = vld [vmem:[#allocation7 + $0x80] sm:$0xff]
    %v149 = vld [vmem:[#allocation7 + $0x88] sm:$0xff]
    %v150 = vld [vmem:[#allocation7 + $0x90] sm:$0xff]
    %v151 = vld [vmem:[#allocation7 + $0x98] sm:$0xff]
    %v152 = vld [vmem:[#allocation7 + $0xa0] sm:$0xff]
    %v153 = vld [vmem:[#allocation7 + $0xa8] sm:$0xff]
    %v154 = vld [vmem:[#allocation7 + $0xb0] sm:$0xff]
    %v155 = vld [vmem:[#allocation7 + $0xb8] sm:$0xff]
    %v156 = vld [vmem:[#allocation7 + $0xc0] sm:$0xff]
    %v157 = vld [vmem:[#allocation7 + $0xc8] sm:$0xff]
    %v158 = vld [vmem:[#allocation7 + $0xd0] sm:$0xff]
    %v159 = vld [vmem:[#allocation7 + $0xd8] sm:$0xff]
    %v160 = vld [vmem:[#allocation7 + $0xe0] sm:$0xff]
    %v161 = vld [vmem:[#allocation7 + $0xe8] sm:$0xff]
    %v162 = vld [vmem:[#allocation7 + $0xf0] sm:$0xff]
    %v163 = vld [vmem:[#allocation7 + $0xf8] sm:$0xff]
    %164 = vmatprep.subr.mxu0 0.0
    %165 = vmatpush1.msra.mxu0 %v147
    %166 = vmatprep.subr.mxu0 0.0
    %167 = vmatpush1.msra.mxu0 %v146
    %168 = vmatprep.subr.mxu0 0.0
    %169 = vmatpush1.msra.mxu0 %v145
    %170 = vmatprep.subr.mxu0 0.0
    %171 = vmatpush1.msra.mxu0 %v144
    %172 = vmatprep.subr.mxu0 0.0
    %173 = vmatpush1.msra.mxu0 %v143
    %174 = vmatprep.subr.mxu0 0.0
    %175 = vmatpush1.msra.mxu0 %v142
    %176 = vmatprep.subr.mxu0 0.0
    %177 = vmatpush1.msra.mxu0 %v141
    %178 = vmatprep.subr.mxu0 0.0
    %179 = vmatpush1.msra.mxu0 %v140
    %180 = vmatprep.subr.mxu0 0.0
    %181 = vmatpush1.msra.mxu0 %v139
    %182 = vmatprep.subr.mxu0 0.0
    %183 = vmatpush1.msra.mxu0 %v138
    %184 = vmatprep.subr.mxu0 0.0
    %185 = vmatpush1.msra.mxu0 %v137
    %186 = vmatprep.subr.mxu0 0.0
    %187 = vmatpush1.msra.mxu0 %v136
    %188 = vmatprep.subr.mxu0 0.0
    %189 = vmatpush1.msra.mxu0 %v135
    %190 = vmatprep.subr.mxu0 0.0
    %191 = vmatpush1.msra.mxu0 %v134
    %192 = vmatprep.subr.mxu0 0.0
    %193 = vmatpush1.msra.mxu0 %v133
    %194 = vmatprep.subr.mxu0 0.0
    %195 = vmatpush1.msra.mxu0 %v132
    %196 = vmatprep.subr.mxu0 0.0
    %197 = vmatpush2.msra.mxu0 %v163
    %198 = vmatprep.subr.mxu0 0.0
    %199 = vmatpush2.msra.mxu0 %v162
    %200 = vmatprep.subr.mxu0 0.0
    %201 = vmatpush2.msra.mxu0 %v161
    %202 = vmatprep.subr.mxu0 0.0
    %203 = vmatpush2.msra.mxu0 %v160
    %204 = vmatprep.subr.mxu0 0.0
    %205 = vmatpush2.msra.mxu0 %v159
    %206 = vmatprep.subr.mxu0 0.0
    %207 = vmatpush2.msra.mxu0 %v158
    %208 = vmatprep.subr.mxu0 0.0
    %209 = vmatpush2.msra.mxu0 %v157
    %210 = vmatprep.subr.mxu0 0.0
    %211 = vmatpush2.msra.mxu0 %v156
    %212 = vmatprep.subr.mxu0 0.0
    %213 = vmatpush2.msra.mxu0 %v155
    %214 = vmatprep.subr.mxu0 0.0
    %215 = vmatpush2.msra.mxu0 %v154
    %216 = vmatprep.subr.mxu0 0.0
    %217 = vmatpush2.msra.mxu0 %v153
    %218 = vmatprep.subr.mxu0 0.0
    %219 = vmatpush2.msra.mxu0 %v152
    %220 = vmatprep.subr.mxu0 0.0
    %221 = vmatpush2.msra.mxu0 %v151
    %222 = vmatprep.subr.mxu0 0.0
    %223 = vmatpush2.msra.mxu0 %v150
    %224 = vmatprep.subr.mxu0 0.0
    %225 = vmatpush2.msra.mxu0 %v149
    %226 = vmatprep.subr.mxu0 0.0
    %227 = vmatpush2.msra.mxu0 %v148
    %228 = vmatprep.mubr.f32.mxu0 %v131
    %229 = vmatmul.mubr.f32.gmra.mxu0 %v130
    %v230 = vpop.f32.mrf.mxu0
    %v231 = vadd.f32 0.0, %v230
    %v232 = vpop.f32.mrf.mxu0
    %233 = vdwg.mxu0
    %234 = vst [vmem:[#allocation8] sm:$0xff] %v231
    // Predicated region
    $region26: #{tpu_custom_call.1} parent=1 // pred_check
      _
    $region27: #{tpu_custom_call.1} parent=1 // pred_check_branch
      %236 = sbr.rel (0) target = $region29
    $region28: #{tpu_custom_call.1} parent=1 // pred_region
      %s238 = ssub.s32 128, 128
      %239 = vsyncadd [#allocation4], %s238
      %s241 = sshll.u32 [#allocation8], 4
      %s242 = int_to_ptr.vmem [resolvable:$true] %s241
      %244 = dma.vmem_to_hbm [thread:$0]  %s242, 128, %s3, [#allocation4]
    $region29: #{tpu_custom_call.1} parent=1 // pred_fallthru
      _
    // Predicated region
    $region30: #{tpu_custom_call.1} parent=1 // pred_check
      _
    $region31: #{tpu_custom_call.1} parent=1 // pred_check_branch
      %246 = sbr.rel (0) target = $region33
    $region32: #{tpu_custom_call.1} parent=1 // pred_region
      %247 = dma.done [#allocation4], 128
    $region33: #{tpu_custom_call.1} parent=1 // pred_fallthru
      _
    %248 = vsyncpa [#allocation3], 1
    %249 = vsyncpa [#allocation6], 1
    %250 = vsyncpa [#allocation4], 1

</llo_original>
